<compile_context>
chip_gen: v6e
topology: v6e:2x2x1
jax: 0.10.0
libtpu: 0.0.40
codegen_flags: <defaults>
</compile_context>

<pallas_src>
import functools

import jax
import jax.numpy as jnp
from jax.experimental import pallas as pl
from jax.experimental.pallas import tpu as pltpu


# Keep 2 inputs x 2 pipeline buffers of (TILE_N, C) under this budget so the
# kernel double-buffers comfortably on every TPU generation (v7x: 64 MiB VMEM).
_DMA_BUDGET_BYTES = 24 * 1024 * 1024
_MAX_TILE_ROWS = 512  # diminishing returns past ~512 rows/tile


def _round_up(x, m):
    return ((x + m - 1) // m) * m


def _sublane_pack(dtype):
    # Rows per sublane-packed vreg: bf16/f16 pack 2 rows, int8/fp8 pack 4.
    return {2: 16, 1: 32}.get(jnp.dtype(dtype).itemsize, 8)


def _kd_loss_kernel(s_ref, t_ref, o_ref, *, inv_temperature):
    # (TILE_N, C) blocks, DMA'd in the stored dtype; compute in f32.
    s = s_ref[...].astype(jnp.float32) * inv_temperature
    t = t_ref[...].astype(jnp.float32) * inv_temperature

    # Student log-softmax pieces (only shifted logits + row LSE are needed).
    s_shift = s - jnp.max(s, axis=-1, keepdims=True)
    s_lse = jnp.log(jnp.sum(jnp.exp(s_shift), axis=-1, keepdims=True))

    # Teacher softmax pieces.
    t_shift = t - jnp.max(t, axis=-1, keepdims=True)
    t_exp = jnp.exp(t_shift)
    t_sum = jnp.sum(t_exp, axis=-1, keepdims=True)
    p = t_exp * pl.reciprocal(t_sum, approx=True)

    # Row KL via:  sum_c p*(log p - log q)
    #            = sum_c p*(t_shift - s_shift) + (s_lse - log(t_sum))
    # (valid because the full class axis lives in this tile, so sum_c p == 1).
    row_kl = (jnp.sum(p * (t_shift - s_shift), axis=-1, keepdims=True)
              + (s_lse - jnp.log(t_sum)))

    # Lane-dense broadcast store of this tile's partial sum; the wrapper does
    # the tiny cross-tile reduction and the divide by N*C.
    o_ref[...] = jnp.full(o_ref.shape, jnp.sum(row_kl), dtype=jnp.float32)


def distillation_loss(student_logit, teacher_logit, T=1.0):
    """Pallas equivalent of DistillationLoss(T)(student_logit, teacher_logit)."""
    assert student_logit.shape == teacher_logit.shape
    assert student_logit.ndim == 2
    n, c = student_logit.shape
    itemsize = jnp.dtype(student_logit.dtype).itemsize
    sub = _sublane_pack(student_logit.dtype)

    # Rows per tile: 2 inputs x 2 buffers x TILE_N x C x itemsize <= budget.
    rows = _DMA_BUDGET_BYTES // max(1, 4 * c * itemsize)
    rows = max(sub, (rows // sub) * sub)
    tile_n = min(rows, _MAX_TILE_ROWS, _round_up(n, sub))

    # Pad the batch so it divides evenly into tiles. Padded rows are all-zero
    # in BOTH inputs -> identical student/teacher distributions -> exactly 0
    # contribution to the KL sum (we still divide by the original N*C).
    n_pad = _round_up(n, tile_n)
    if n_pad != n:
        pad = ((0, n_pad - n), (0, 0))
        student_logit = jnp.pad(student_logit, pad)
        teacher_logit = jnp.pad(teacher_logit, pad)
    num_tiles = n_pad // tile_n

    # TODO(synk): for very large C (e.g. >=128K vocab) add an inner two-pass /
    # online-softmax loop over class chunks instead of shrinking TILE_N.

    vmem_limit = int(min(48 * 1024 * 1024,
                         max(8 * 1024 * 1024,
                             4 * tile_n * c * itemsize + 2 * 1024 * 1024)))

    kernel = functools.partial(_kd_loss_kernel, inv_temperature=1.0 / float(T))
    partials = pl.pallas_call(
        kernel,
        out_shape=jax.ShapeDtypeStruct((num_tiles, 8, 128), jnp.float32),
        grid=(num_tiles,),
        in_specs=[
            pl.BlockSpec((tile_n, c), lambda i: (i, 0)),
            pl.BlockSpec((tile_n, c), lambda i: (i, 0)),
        ],
        out_specs=pl.BlockSpec((1, 8, 128), lambda i: (i, 0, 0)),
        compiler_params=pltpu.CompilerParams(
            dimension_semantics=("parallel",),
            vmem_limit_bytes=vmem_limit,
        ),
    )(student_logit, teacher_logit)

    # nn.KLDivLoss default reduction ('mean') averages over all N*C elements.
    return jnp.sum(partials[:, 0, 0]) / jnp.float32(n * c)


def _reference_loss(student_logit, teacher_logit, T=1.0):
    s = student_logit.astype(jnp.float32) / T
    t = teacher_logit.astype(jnp.float32) / T
    log_q = jax.nn.log_softmax(s, axis=1)
    p = jax.nn.softmax(t, axis=1)
    log_p = jax.nn.log_softmax(t, axis=1)
    return jnp.mean(p * (log_p - log_q))


if __name__ == "__main__":
    key = jax.random.PRNGKey(0)
    k_s, k_t = jax.random.split(key)
    # Small shapes: batch=8, num_classes=32 (PyTorch dim=1 == lane axis here).
    student = jax.random.normal(k_s, (8, 32), dtype=jnp.float32)
    teacher = jax.random.normal(k_t, (8, 32), dtype=jnp.float32)

    loss = distillation_loss(student, teacher, T=2.0)
    jax.block_until_ready(loss)

    ref = _reference_loss(student, teacher, T=2.0)
    assert jnp.allclose(loss, ref, rtol=5e-3, atol=1e-6), (loss, ref)
    print("KERNEL_OK")
</pallas_src>

<mosaic_0001>
module attributes {stable_mosaic.version = 11 : i64} {
  func.func @_kd_loss_kernel(%arg0: i32, %arg1: memref<8x32xf32, #tpu.memory_space<vmem>>, %arg2: memref<8x32xf32, #tpu.memory_space<vmem>>, %arg3: memref<1x8x128xf32, #tpu.memory_space<vmem>>) attributes {dimension_semantics = [#tpu.dimension_semantics<parallel>], iteration_bounds = array<i64: 1>, scalar_prefetch = 0 : i64, scratch_operands = 0 : i64, tpu.core_type = #tpu.core_type<tc>, window_params = [{transform_indices = @transform_0, window_bounds = array<i64: 8, 32>}, {transform_indices = @transform_1, window_bounds = array<i64: 8, 32>}, {transform_indices = @transform_2, window_bounds = array<i64: 1, 8, 128>}]} {
    %c0 = arith.constant 0 : index
    %c0_0 = arith.constant 0 : index
    %0 = vector.load %arg1[%c0, %c0_0] : memref<8x32xf32, #tpu.memory_space<vmem>>, vector<8x32xf32>
    %cst = arith.constant 5.000000e-01 : f32
    %1 = vector.broadcast %cst : f32 to vector<8x32xf32>
    %2 = arith.mulf %0, %1 : vector<8x32xf32>
    %c0_1 = arith.constant 0 : index
    %c0_2 = arith.constant 0 : index
    %3 = vector.load %arg2[%c0_1, %c0_2] : memref<8x32xf32, #tpu.memory_space<vmem>>, vector<8x32xf32>
    %cst_3 = arith.constant 5.000000e-01 : f32
    %4 = vector.broadcast %cst_3 : f32 to vector<8x32xf32>
    %5 = arith.mulf %3, %4 : vector<8x32xf32>
    %cst_4 = arith.constant dense<0xFF800000> : vector<8xf32>
    %6 = vector.multi_reduction <maximumf>, %2, %cst_4 [1] : vector<8x32xf32> to vector<8xf32>
    %7 = vector.shape_cast %6 : vector<8xf32> to vector<8x1xf32>
    %8 = vector.broadcast %7 : vector<8x1xf32> to vector<8x32xf32>
    %9 = arith.subf %2, %8 : vector<8x32xf32>
    %10 = math.exp %9 : vector<8x32xf32>
    %cst_5 = arith.constant dense<0.000000e+00> : vector<8xf32>
    %11 = vector.multi_reduction <add>, %10, %cst_5 [1] : vector<8x32xf32> to vector<8xf32>
    %12 = vector.shape_cast %11 : vector<8xf32> to vector<8x1xf32>
    %13 = math.log %12 : vector<8x1xf32>
    %cst_6 = arith.constant dense<0xFF800000> : vector<8xf32>
    %14 = vector.multi_reduction <maximumf>, %5, %cst_6 [1] : vector<8x32xf32> to vector<8xf32>
    %15 = vector.shape_cast %14 : vector<8xf32> to vector<8x1xf32>
    %16 = vector.broadcast %15 : vector<8x1xf32> to vector<8x32xf32>
    %17 = arith.subf %5, %16 : vector<8x32xf32>
    %18 = math.exp %17 : vector<8x32xf32>
    %cst_7 = arith.constant dense<0.000000e+00> : vector<8xf32>
    %19 = vector.multi_reduction <add>, %18, %cst_7 [1] : vector<8x32xf32> to vector<8xf32>
    %20 = vector.shape_cast %19 : vector<8xf32> to vector<8x1xf32>
    %21 = tpu.reciprocal %20 {approx = true} : vector<8x1xf32> -> vector<8x1xf32>
    %22 = vector.broadcast %21 : vector<8x1xf32> to vector<8x32xf32>
    %23 = arith.mulf %18, %22 : vector<8x32xf32>
    %24 = arith.subf %17, %9 : vector<8x32xf32>
    %25 = arith.mulf %23, %24 : vector<8x32xf32>
    %cst_8 = arith.constant dense<0.000000e+00> : vector<8xf32>
    %26 = vector.multi_reduction <add>, %25, %cst_8 [1] : vector<8x32xf32> to vector<8xf32>
    %27 = vector.shape_cast %26 : vector<8xf32> to vector<8x1xf32>
    %28 = math.log %20 : vector<8x1xf32>
    %29 = arith.subf %13, %28 : vector<8x1xf32>
    %30 = arith.addf %27, %29 : vector<8x1xf32>
    %31 = vector.shape_cast %30 : vector<8x1xf32> to vector<1x8x1xf32>
    %cst_9 = arith.constant dense<0.000000e+00> : vector<1xf32>
    %32 = vector.multi_reduction <add>, %31, %cst_9 [1, 2] : vector<1x8x1xf32> to vector<1xf32>
    %33 = vector.shape_cast %32 : vector<1xf32> to vector<1x1x1xf32>
    %34 = vector.extract %33[0, 0, 0] : f32 from vector<1x1x1xf32>
    %35 = vector.broadcast %34 : f32 to vector<1x8x128xf32>
    %c0_10 = arith.constant 0 : index
    %c0_11 = arith.constant 0 : index
    %c0_12 = arith.constant 0 : index
    %36 = vector.load %arg3[%c0_10, %c0_11, %c0_12] : memref<1x8x128xf32, #tpu.memory_space<vmem>>, vector<1x8x128xf32>
    tpu.vector_store %arg3[%c0_10, %c0_11, %c0_12], %35 {strides = array<i32>} : memref<1x8x128xf32, #tpu.memory_space<vmem>>, vector<1x8x128xf32>,
    return
  }
  func.func @transform_0(%arg0: i32) -> (i32, i32) {
    %c0_i32 = arith.constant 0 : i32
    %c0_i32_0 = arith.constant 0 : i32
    return %arg0, %c0_i32 : i32, i32
  }
  func.func @transform_1(%arg0: i32) -> (i32, i32) {
    %c0_i32 = arith.constant 0 : i32
    %c0_i32_0 = arith.constant 0 : i32
    return %arg0, %c0_i32 : i32, i32
  }
  func.func @transform_2(%arg0: i32) -> (i32, i32, i32) {
    %c0_i32 = arith.constant 0 : i32
    %c0_i32_0 = arith.constant 0 : i32
    %c0_i32_1 = arith.constant 0 : i32
    return %arg0, %c0_i32, %c0_i32_0 : i32, i32, i32
  }
}

</mosaic_0001>

<llo_original>
// kernel: tpu_custom_call.1
$region0: #{tpu_custom_call.1}
  #allocation0 [shape = 'u32[]', space=smem, size = 0x4, offset = 0x4, fixed_abs, tag = 'smem constant byte address 0x4 - core index']
  #allocation1 [shape = 'u32[144,128]{1,0:T(1,128)}', space=vmem, size = 0x12000, scoped, tag = 'internal scratch']
  %s0 = inlined_call_operand.hbm [shape: f32[8,32], index: 0, kind: input, shape index: {}]
  %s1 = inlined_call_operand.hbm [shape: f32[8,32], index: 1, kind: input, shape index: {}]
  %s2 = inlined_call_operand.hbm [shape: f32[1,8,128], index: 2, kind: output, shape index: {}]
  %s3 = sld [smem:[#allocation0]]
  $region26: #{tpu_custom_call.1} parent=0
    _
  %s5 = ssub.s32 1, %s3
  %s6 = scalar_select 0, %s5, %s3
  $region1: #{tpu_custom_call.1} parent=0
    #allocation2 [shape = 'u8[4096]{0}', space=vmem, size = 0x1000, scoped, tag = 'input window, operand 0, single buffered']
    #allocation3 [shape = 's32[1]{0}', space=sflag, size = 0x4, scoped, tag = 'scoped memory for tpu_custom_call.1']
    #allocation4 [shape = 's32[1]{0}', space=sflag, size = 0x4, scoped, tag = 'scoped memory for tpu_custom_call.1']
    #allocation5 [shape = 'u8[4096]{0}', space=vmem, size = 0x1000, scoped, tag = 'input window, operand 1, single buffered']
    #allocation6 [shape = 's32[1]{0}', space=sflag, size = 0x4, scoped, tag = 'scoped memory for tpu_custom_call.1']
    #allocation7 [shape = 'u8[4096]{0}', space=vmem, size = 0x1000, scoped, tag = 'output window, operand 0, single buffered']
    %7 = vsyncpa [#allocation3], 0
    %8 = vsyncpa [#allocation6], 0
    %9 = vsyncpa [#allocation4], 0
    // Predicated region
    $region2: #{tpu_custom_call.1} parent=1 // pred_check
      _
    $region3: #{tpu_custom_call.1} parent=1 // pred_check_branch
      %11 = sbr.rel (0) target = $region5
    $region4: #{tpu_custom_call.1} parent=1 // pred_region
      %s13 = ssub.s32 128, 128
      %14 = vsyncadd [#allocation3], %s13
      %s16 = sshll.u32 [#allocation2], 4
      %s17 = int_to_ptr.vmem [resolvable:$true] %s16
      %19 = dma.hbm_to_vmem [thread:$0]  %s0, 128, %s17, [#allocation3]
    $region5: #{tpu_custom_call.1} parent=1 // pred_fallthru
      _
    // Predicated region
    $region6: #{tpu_custom_call.1} parent=1 // pred_check
      _
    $region7: #{tpu_custom_call.1} parent=1 // pred_check_branch
      %21 = sbr.rel (0) target = $region9
    $region8: #{tpu_custom_call.1} parent=1 // pred_region
      %s23 = ssub.s32 128, 128
      %24 = vsyncadd [#allocation6], %s23
      %s26 = sshll.u32 [#allocation5], 4
      %s27 = int_to_ptr.vmem [resolvable:$true] %s26
      %29 = dma.hbm_to_vmem [thread:$0]  %s1, 128, %s27, [#allocation6]
    $region9: #{tpu_custom_call.1} parent=1 // pred_fallthru
      _
    // Predicated region
    $region10: #{tpu_custom_call.1} parent=1 // pred_check
      _
    $region11: #{tpu_custom_call.1} parent=1 // pred_check_branch
      %31 = sbr.rel (0) target = $region13
    $region12: #{tpu_custom_call.1} parent=1 // pred_region
      %32 = dma.done [#allocation3], 128
    $region13: #{tpu_custom_call.1} parent=1 // pred_fallthru
      _
    // Predicated region
    $region14: #{tpu_custom_call.1} parent=1 // pred_check
      _
    $region15: #{tpu_custom_call.1} parent=1 // pred_check_branch
      %34 = sbr.rel (0) target = $region17
    $region16: #{tpu_custom_call.1} parent=1 // pred_region
      %35 = dma.done [#allocation6], 128
    $region17: #{tpu_custom_call.1} parent=1 // pred_fallthru
      _
    %v36 = vld [vmem:[#allocation2] sm:$0xff]
    %v37 = vmul.f32 %v36, 0.5
    %v38 = vld [vmem:[#allocation5] sm:$0xff]
    %v39 = vmul.f32 %v38, 0.5
    %vm40 = vcmask 261120
    %v41 = vsel %vm40, %v37, -inf
    %42 = vmax.xlane.f32.xlu0 %v41
    %v43 = vpop.xlane.xlu0 %42
    %v44 = vsub.f32 %v37, %v43
    %v45 = vmul.f32 %v44, 1.442695
    %v46 = vpow.pop %v45
    %v47 = vsel %vm40, %v46, 0.0
    %48 = vadd.xlane.f32.xlu0 %v47
    %v49 = vpop.xlane.xlu0 %48
    %v50 = vlog2.pop %v49
    %v51 = vmul.f32 %v50, 0.6931472
    %v52 = vsel %vm40, %v39, -inf
    %53 = vmax.xlane.f32.xlu0 %v52
    %v54 = vpop.xlane.xlu0 %53
    %v55 = vsub.f32 %v39, %v54
    %v56 = vmul.f32 %v55, 1.442695
    %v57 = vpow.pop %v56
    %v58 = vsel %vm40, %v57, 0.0
    %59 = vadd.xlane.f32.xlu0 %v58
    %v60 = vpop.xlane.xlu0 %59
    %v61 = vrcp.pop %v60
    %v62 = vmul.f32 %v57, %v61
    %v63 = vsub.f32 %v55, %v44
    %v64 = vmul.f32 %v62, %v63
    %v65 = vsel %vm40, %v64, 0.0
    %66 = vadd.xlane.f32.xlu0 %v65
    %v67 = vpop.xlane.xlu0 %66
    %v68 = vlog2.pop %v60
    %v69 = vmul.f32 %v68, 0.6931472
    %v70 = vsub.f32 %v51, %v69
    %v71 = vadd.f32 %v67, %v70
    %vm72 = vcmask 7168
    %v73 = vsel %vm72, %v71, 0.0
    %74 = vadd.xlane.f32.xlu0 %v73
    %v75 = vpop.xlane.xlu0 %74
    %v76 = vrot.slane %v75, 4
    %v77 = vadd.f32 %v75, %v76
    %v78 = vrot.slane %v77, 2
    %v79 = vadd.f32 %v77, %v78
    %v80 = vrot.slane %v79, 1
    %v81 = vadd.f32 %v79, %v80
    %s82 = vtos %v81
    %v83 = vstv %s82
    %84 = vst [vmem:[#allocation7] sm:$0xff] %v83
    // Predicated region
    $region18: #{tpu_custom_call.1} parent=1 // pred_check
      _
    $region19: #{tpu_custom_call.1} parent=1 // pred_check_branch
      %86 = sbr.rel (0) target = $region21
    $region20: #{tpu_custom_call.1} parent=1 // pred_region
      %s88 = ssub.s32 128, 128
      %89 = vsyncadd [#allocation4], %s88
      %s91 = sshll.u32 [#allocation7], 4
      %s92 = int_to_ptr.vmem [resolvable:$true] %s91
      %94 = dma.vmem_to_hbm [thread:$0]  %s92, 128, %s2, [#allocation4]
    $region21: #{tpu_custom_call.1} parent=1 // pred_fallthru
      _
    // Predicated region
    $region22: #{tpu_custom_call.1} parent=1 // pred_check
      _
    $region23: #{tpu_custom_call.1} parent=1 // pred_check_branch
      %96 = sbr.rel (0) target = $region25
    $region24: #{tpu_custom_call.1} parent=1 // pred_region
      %97 = dma.done [#allocation4], 128
    $region25: #{tpu_custom_call.1} parent=1 // pred_fallthru
      _
    %98 = vsyncpa [#allocation3], 1
    %99 = vsyncpa [#allocation6], 1
    %100 = vsyncpa [#allocation4], 1

</llo_original>
